<compile_context>
chip_gen: v7x
topology: tpu7x:2x2x1
jax: 0.10.0
libtpu: 0.0.40
codegen_flags: <defaults>
</compile_context>

<pallas_src>
import jax
import jax.numpy as jnp
from jax import lax
from jax.experimental import pallas as pl
from jax.experimental.pallas import tpu as pltpu


def _normalize_kernel(a_ref, w_ref, wwt_ref, xn_ref):
    """Prologue: build one row block of the stacked normalized features.

    a_ref  : (T, d)    raw feature rows for this block
    w_ref  : (P, d)    per-perspective weights (whole tensor, constant index)
    wwt_ref: (d, P)    (w*w)^T, precomputed in the wrapper (pure layout)
    xn_ref : (T, P*d)  output: slice [p*d:(p+1)*d] holds
                       F.normalize(a * w[p], p=2, dim=-1) / sqrt(P)
    """
    num_pers, d = w_ref.shape
    a = a_ref[...].astype(jnp.float32)
    w = w_ref[...].astype(jnp.float32)
    wwt = wwt_ref[...].astype(jnp.float32)

    # Squared L2 norms of a*w[p] for ALL perspectives with ONE MXU matmul:
    # ss[i, p] = sum_j a[i,j]^2 * w[p,j]^2  ->  (T, P)
    ss = jnp.dot(a * a, wwt, preferred_element_type=jnp.float32)
    # rsqrt(max(ss, eps^2)) == 1 / max(||x||_2, eps), eps = 1e-12 (F.normalize).
    # Fold the 1/num_pers mean of the downstream matmul as 1/sqrt(P) here.
    inv = lax.rsqrt(jnp.maximum(ss, 1e-24)) * (num_pers ** -0.5)   # (T, P)

    # Static unrolled loop over the (small) number of perspectives; each slice
    # write is a lane slice of the output block (prologue-only, off hot path).
    for p in range(num_pers):
        xn_ref[:, p * d:(p + 1) * d] = (
            (a * w[p:p + 1, :]) * inv[:, p:p + 1]
        ).astype(xn_ref.dtype)


def _att_tile_kernel(xn_ref, xnt_ref, out_ref):
    """Main loop: one (TM, TN) output tile = canonical (M,K)@(K,N) + ReLU.

    xn_ref : (TM, K)   row block of normalized stacked features
    xnt_ref: (K, TN)   pre-transposed col block
    out_ref: (TM, TN)  float32 attention tile
    """
    att = jnp.dot(xn_ref[...], xnt_ref[...], preferred_element_type=jnp.float32)
    # mask = (att > 0); att * mask + 0 * (1 - mask)  ==  ReLU
    out_ref[...] = jnp.maximum(att, 0.0).astype(out_ref.dtype)


def graph_learner_forward(features, weight_tensor, *, max_tile=512,
                          matmul_dtype=jnp.float32):
    """features: (N, d), weight_tensor: (num_pers, d) -> (N, N) float32.

    matmul_dtype: dtype of the MXU operands (xn / xn^T).  jnp.bfloat16 gives
    ~3-4x MXU throughput on v6e/v7x at ~1e-2 accuracy on the cosine values.
    """
    N, d = features.shape
    num_pers = weight_tensor.shape[0]
    K = num_pers * d

    # Pad N up so output stores are lane-dense and the tile divides n_pad.
    # Padded feature rows are zero -> normalize to zero -> contribute nothing.
    n128 = max(128, ((N + 127) // 128) * 128)
    tile = min(max_tile, n128)                      # don't blow up tiny inputs
    n_pad = ((N + tile - 1) // tile) * tile
    feats = features
    if n_pad != N:
        feats = jnp.pad(features, ((0, n_pad - N), (0, 0)))

    w = weight_tensor.astype(jnp.float32)
    wwt = jnp.transpose(w * w)                      # (d, P) — layout plumbing

    # ---- Prologue: stacked normalized features, computed ONCE per row block.
    xn = pl.pallas_call(
        _normalize_kernel,
        out_shape=jax.ShapeDtypeStruct((n_pad, K), matmul_dtype),
        grid_spec=pltpu.PrefetchScalarGridSpec(
            num_scalar_prefetch=0,
            grid=(n_pad // tile,),
            in_specs=[
                pl.BlockSpec((tile, d), lambda i: (i, 0)),
                pl.BlockSpec((num_pers, d), lambda i: (0, 0)),
                pl.BlockSpec((d, num_pers), lambda i: (0, 0)),
            ],
            out_specs=pl.BlockSpec((tile, K), lambda i: (i, 0)),
        ),
        compiler_params=pltpu.CompilerParams(
            dimension_semantics=("parallel",),
        ),
    )(feats, w, wwt)

    # Pre-transpose the column operand once (few MiB HBM round-trip) so the
    # main kernel never pays a per-tile XLU transpose.
    xnt = jnp.transpose(xn)                         # (K, n_pad)

    # ---- Main loop: tiled xn @ xn^T (mean already folded in) + ReLU.
    grid = (n_pad // tile, n_pad // tile)
    out = pl.pallas_call(
        _att_tile_kernel,
        out_shape=jax.ShapeDtypeStruct((n_pad, n_pad), jnp.float32),
        grid_spec=pltpu.PrefetchScalarGridSpec(
            num_scalar_prefetch=0,
            grid=grid,
            in_specs=[
                pl.BlockSpec((tile, K), lambda i, j: (i, 0)),
                pl.BlockSpec((K, tile), lambda i, j: (0, j)),
            ],
            out_specs=pl.BlockSpec((tile, tile), lambda i, j: (i, j)),
        ),
        compiler_params=pltpu.CompilerParams(
            dimension_semantics=("parallel", "parallel"),
        ),
    )(xn, xnt)

    return out[:N, :N]


def _xavier_uniform(key, shape, dtype=jnp.float32):
    fan_out, fan_in = shape  # (num_pers, input_size)
    bound = jnp.sqrt(6.0 / (fan_in + fan_out))
    return jax.random.uniform(key, shape, dtype=dtype, minval=-bound, maxval=bound)


def _reference_forward(features, weight_tensor):
    # Pure-JAX mirror of the PyTorch GraphLearner.forward
    x = features[None, :, :] * weight_tensor[:, None, :]            # (P, N, d)
    norm = jnp.sqrt(jnp.sum(x * x, axis=-1, keepdims=True))
    xn = x / jnp.maximum(norm, 1e-12)
    att = jnp.einsum("pnd,pmd->pnm", xn, xn).mean(0)                # (N, N)
    return jnp.where(att > 0, att, 0.0)


if __name__ == "__main__":
    key = jax.random.PRNGKey(0)
    k_feat, k_w = jax.random.split(key)

    N, d, num_pers = 16, 32, 4  # num_pers matches args.graph_learn_num_pers default
    features = jax.random.normal(k_feat, (N, d), dtype=jnp.float32)
    weight_tensor = _xavier_uniform(k_w, (num_pers, d))

    ref = _reference_forward(features, weight_tensor)

    # f32 MXU operands: matches PyTorch semantics to tight tolerance.
    out = jax.block_until_ready(graph_learner_forward(features, weight_tensor))
    assert out.shape == (N, N)
    assert jnp.allclose(out, ref, atol=5e-5, rtol=5e-5), "f32 mismatch vs reference"

    # bf16 MXU operands (v6e/v7x throughput path): looser tolerance.
    out_bf16 = jax.block_until_ready(
        graph_learner_forward(features, weight_tensor, matmul_dtype=jnp.bfloat16))
    assert jnp.allclose(out_bf16, ref, atol=2e-2, rtol=2e-2), "bf16 mismatch vs reference"

    print("KERNEL_OK")
</pallas_src>

<mosaic_0001>
module attributes {stable_mosaic.version = 11 : i64} {
  func.func @_normalize_kernel(%arg0: i32, %arg1: memref<128x32xf32, #tpu.memory_space<vmem>>, %arg2: memref<4x32xf32, #tpu.memory_space<vmem>>, %arg3: memref<32x4xf32, #tpu.memory_space<vmem>>, %arg4: memref<128x128xf32, #tpu.memory_space<vmem>>) attributes {dimension_semantics = [#tpu.dimension_semantics<parallel>], iteration_bounds = array<i64: 1>, scalar_prefetch = 0 : i64, scratch_operands = 0 : i64, tpu.core_type = #tpu.core_type<tc>, window_params = [{transform_indices = @transform_0, window_bounds = array<i64: 128, 32>}, {pipeline_mode = #tpu.pipeline_mode<synchronous>, transform_indices = @transform_1, window_bounds = array<i64: 4, 32>}, {pipeline_mode = #tpu.pipeline_mode<synchronous>, transform_indices = @transform_2, window_bounds = array<i64: 32, 4>}, {transform_indices = @transform_3, window_bounds = array<i64: 128, 128>}]} {
    %c0 = arith.constant 0 : index
    %c0_0 = arith.constant 0 : index
    %0 = vector.load %arg1[%c0, %c0_0] : memref<128x32xf32, #tpu.memory_space<vmem>>, vector<128x32xf32>
    %c0_1 = arith.constant 0 : index
    %c0_2 = arith.constant 0 : index
    %1 = vector.load %arg2[%c0_1, %c0_2] : memref<4x32xf32, #tpu.memory_space<vmem>>, vector<4x32xf32>
    %c0_3 = arith.constant 0 : index
    %c0_4 = arith.constant 0 : index
    %2 = vector.load %arg3[%c0_3, %c0_4] : memref<32x4xf32, #tpu.memory_space<vmem>>, vector<32x4xf32>
    %3 = arith.mulf %0, %0 : vector<128x32xf32>
    %cst = arith.constant dense<0.000000e+00> : vector<128x4xf32>
    %4 = tpu.matmul %3, %2, %cst {dimension_numbers = #tpu.dot_dimension_numbers<[1], [0], [0], [1], [0, 0, 1, 1], [], []>} : vector<128x32xf32>, vector<32x4xf32>, vector<128x4xf32> -> vector<128x4xf32>
    %cst_5 = arith.constant 1.000000e-24 : f32
    %5 = vector.broadcast %cst_5 : f32 to vector<128x4xf32>
    %6 = arith.maximumf %4, %5 : vector<128x4xf32>
    %7 = math.rsqrt %6 : vector<128x4xf32>
    %cst_6 = arith.constant 5.000000e-01 : f32
    %8 = vector.broadcast %cst_6 : f32 to vector<128x4xf32>
    %9 = arith.mulf %7, %8 : vector<128x4xf32>
    %10 = vector.extract_strided_slice %1 {offsets = [0, 0], sizes = [1, 32], strides = [1, 1]} : vector<4x32xf32> to vector<1x32xf32>
    %11 = vector.broadcast %10 : vector<1x32xf32> to vector<128x32xf32>
    %12 = arith.mulf %0, %11 : vector<128x32xf32>
    %13 = vector.extract_strided_slice %9 {offsets = [0, 0], sizes = [128, 1], strides = [1, 1]} : vector<128x4xf32> to vector<128x1xf32>
    %14 = vector.broadcast %13 : vector<128x1xf32> to vector<128x32xf32>
    %15 = arith.mulf %12, %14 : vector<128x32xf32>
    %c0_7 = arith.constant 0 : index
    %c0_8 = arith.constant 0 : index
    %16 = vector.load %arg4[%c0_7, %c0_8] : memref<128x128xf32, #tpu.memory_space<vmem>>, vector<128x32xf32>
    tpu.vector_store %arg4[%c0_7, %c0_8], %15 {strides = array<i32>} : memref<128x128xf32, #tpu.memory_space<vmem>>, vector<128x32xf32>,
    %17 = vector.extract_strided_slice %1 {offsets = [1, 0], sizes = [1, 32], strides = [1, 1]} : vector<4x32xf32> to vector<1x32xf32>
    %18 = vector.broadcast %17 : vector<1x32xf32> to vector<128x32xf32>
    %19 = arith.mulf %0, %18 : vector<128x32xf32>
    %20 = vector.extract_strided_slice %9 {offsets = [0, 1], sizes = [128, 1], strides = [1, 1]} : vector<128x4xf32> to vector<128x1xf32>
    %21 = vector.broadcast %20 : vector<128x1xf32> to vector<128x32xf32>
    %22 = arith.mulf %19, %21 : vector<128x32xf32>
    %c0_9 = arith.constant 0 : index
    %c32 = arith.constant 32 : index
    %23 = vector.load %arg4[%c0_9, %c32] : memref<128x128xf32, #tpu.memory_space<vmem>>, vector<128x32xf32>
    tpu.vector_store %arg4[%c0_9, %c32], %22 {strides = array<i32>} : memref<128x128xf32, #tpu.memory_space<vmem>>, vector<128x32xf32>,
    %24 = vector.extract_strided_slice %1 {offsets = [2, 0], sizes = [1, 32], strides = [1, 1]} : vector<4x32xf32> to vector<1x32xf32>
    %25 = vector.broadcast %24 : vector<1x32xf32> to vector<128x32xf32>
    %26 = arith.mulf %0, %25 : vector<128x32xf32>
    %27 = vector.extract_strided_slice %9 {offsets = [0, 2], sizes = [128, 1], strides = [1, 1]} : vector<128x4xf32> to vector<128x1xf32>
    %28 = vector.broadcast %27 : vector<128x1xf32> to vector<128x32xf32>
    %29 = arith.mulf %26, %28 : vector<128x32xf32>
    %c0_10 = arith.constant 0 : index
    %c64 = arith.constant 64 : index
    %30 = vector.load %arg4[%c0_10, %c64] : memref<128x128xf32, #tpu.memory_space<vmem>>, vector<128x32xf32>
    tpu.vector_store %arg4[%c0_10, %c64], %29 {strides = array<i32>} : memref<128x128xf32, #tpu.memory_space<vmem>>, vector<128x32xf32>,
    %31 = vector.extract_strided_slice %1 {offsets = [3, 0], sizes = [1, 32], strides = [1, 1]} : vector<4x32xf32> to vector<1x32xf32>
    %32 = vector.broadcast %31 : vector<1x32xf32> to vector<128x32xf32>
    %33 = arith.mulf %0, %32 : vector<128x32xf32>
    %34 = vector.extract_strided_slice %9 {offsets = [0, 3], sizes = [128, 1], strides = [1, 1]} : vector<128x4xf32> to vector<128x1xf32>
    %35 = vector.broadcast %34 : vector<128x1xf32> to vector<128x32xf32>
    %36 = arith.mulf %33, %35 : vector<128x32xf32>
    %c0_11 = arith.constant 0 : index
    %c96 = arith.constant 96 : index
    %37 = vector.load %arg4[%c0_11, %c96] : memref<128x128xf32, #tpu.memory_space<vmem>>, vector<128x32xf32>
    tpu.vector_store %arg4[%c0_11, %c96], %36 {strides = array<i32>} : memref<128x128xf32, #tpu.memory_space<vmem>>, vector<128x32xf32>,
    return
  }
  func.func @transform_0(%arg0: i32) -> (i32, i32) {
    %c0_i32 = arith.constant 0 : i32
    %c0_i32_0 = arith.constant 0 : i32
    return %arg0, %c0_i32 : i32, i32
  }
  func.func @transform_1(%arg0: i32) -> (i32, i32) {
    %c0_i32 = arith.constant 0 : i32
    %c0_i32_0 = arith.constant 0 : i32
    %c0_i32_1 = arith.constant 0 : i32
    return %c0_i32, %c0_i32_0 : i32, i32
  }
  func.func @transform_2(%arg0: i32) -> (i32, i32) {
    %c0_i32 = arith.constant 0 : i32
    %c0_i32_0 = arith.constant 0 : i32
    %c0_i32_1 = arith.constant 0 : i32
    return %c0_i32, %c0_i32_0 : i32, i32
  }
  func.func @transform_3(%arg0: i32) -> (i32, i32) {
    %c0_i32 = arith.constant 0 : i32
    %c0_i32_0 = arith.constant 0 : i32
    return %arg0, %c0_i32 : i32, i32
  }
}

</mosaic_0001>

<llo_original>
// kernel: tpu_custom_call.1
$region0: #{tpu_custom_call.1}
  #allocation0 [shape = 'u32[]', space=smem, size = 0x4, offset = 0x4, fixed_abs, tag = 'smem constant byte address 0x4 - core index']
  #allocation1 [shape = 'u32[144,128]{1,0:T(1,128)}', space=vmem, size = 0x12000, scoped, tag = 'internal scratch']
  %s0 = inlined_call_operand.vmem [shape: f32[128,32], index: 0, kind: input, shape index: {}]
  %s1 = inlined_call_operand.vmem [shape: f32[4,32], index: 1, kind: input, shape index: {}]
  %s2 = inlined_call_operand.vmem [shape: f32[32,4], index: 2, kind: input, shape index: {}]
  %s3 = inlined_call_operand.hbm [shape: f32[128,128], index: 3, kind: output, shape index: {}]
  %s4 = sld [smem:[#allocation0]]
  $region22: #{tpu_custom_call.1} parent=0
    _
  %s6 = ssub.s32 1, %s4
  %s7 = scalar_select 0, %s6, %s4
  $region1: #{tpu_custom_call.1} parent=0
    #allocation2 [shape = 'u8[65536]{0}', space=vmem, size = 0x10000, scoped, tag = 'output window, operand 0, single buffered']
    #allocation3 [shape = 's32[1]{0}', space=sflag, size = 0x4, scoped, tag = 'scoped memory for tpu_custom_call.1']
    %8 = vsyncpa [#allocation3], 0
    // Predicated region
    $region2: #{tpu_custom_call.1} parent=1 // pred_check
      _
    $region3: #{tpu_custom_call.1} parent=1 // pred_check_branch
      %10 = sbr.rel (0) target = $region5
    $region4: #{tpu_custom_call.1} parent=1 // pred_region
      _
    $region5: #{tpu_custom_call.1} parent=1 // pred_fallthru
      _
    // Predicated region
    $region6: #{tpu_custom_call.1} parent=1 // pred_check
      _
    $region7: #{tpu_custom_call.1} parent=1 // pred_check_branch
      %12 = sbr.rel (0) target = $region9
    $region8: #{tpu_custom_call.1} parent=1 // pred_region
      _
    $region9: #{tpu_custom_call.1} parent=1 // pred_fallthru
      _
    // Predicated region
    $region10: #{tpu_custom_call.1} parent=1 // pred_check
      _
    $region11: #{tpu_custom_call.1} parent=1 // pred_check_branch
      %14 = sbr.rel (0) target = $region13
    $region12: #{tpu_custom_call.1} parent=1 // pred_region
      _
    $region13: #{tpu_custom_call.1} parent=1 // pred_fallthru
      _
    %v15 = vld [vmem:[%s0] sm:$0xff]
    %v16 = vld [vmem:[%s0 + $0x8] sm:$0xff]
    %v17 = vld [vmem:[%s0 + $0x10] sm:$0xff]
    %v18 = vld [vmem:[%s0 + $0x18] sm:$0xff]
    %v19 = vld [vmem:[%s0 + $0x20] sm:$0xff]
    %v20 = vld [vmem:[%s0 + $0x28] sm:$0xff]
    %v21 = vld [vmem:[%s0 + $0x30] sm:$0xff]
    %v22 = vld [vmem:[%s0 + $0x38] sm:$0xff]
    %v23 = vld [vmem:[%s0 + $0x40] sm:$0xff]
    %v24 = vld [vmem:[%s0 + $0x48] sm:$0xff]
    %v25 = vld [vmem:[%s0 + $0x50] sm:$0xff]
    %v26 = vld [vmem:[%s0 + $0x58] sm:$0xff]
    %v27 = vld [vmem:[%s0 + $0x60] sm:$0xff]
    %v28 = vld [vmem:[%s0 + $0x68] sm:$0xff]
    %v29 = vld [vmem:[%s0 + $0x70] sm:$0xff]
    %v30 = vld [vmem:[%s0 + $0x78] sm:$0xff]
    %v31 = vld [vmem:[%s1] sm:$0xf]
    %v32 = vld [vmem:[%s2] sm:$0xff]
    %v33 = vld [vmem:[%s2 + $0x8] sm:$0xff]
    %v34 = vld [vmem:[%s2 + $0x10] sm:$0xff]
    %v35 = vld [vmem:[%s2 + $0x18] sm:$0xff]
    %v36 = vmul.f32 %v15, %v15
    %v37 = vmul.f32 %v16, %v16
    %v38 = vmul.f32 %v17, %v17
    %v39 = vmul.f32 %v18, %v18
    %v40 = vmul.f32 %v19, %v19
    %v41 = vmul.f32 %v20, %v20
    %v42 = vmul.f32 %v21, %v21
    %v43 = vmul.f32 %v22, %v22
    %v44 = vmul.f32 %v23, %v23
    %v45 = vmul.f32 %v24, %v24
    %v46 = vmul.f32 %v25, %v25
    %v47 = vmul.f32 %v26, %v26
    %v48 = vmul.f32 %v27, %v27
    %v49 = vmul.f32 %v28, %v28
    %v50 = vmul.f32 %v29, %v29
    %v51 = vmul.f32 %v30, %v30
    %vm52 = vcmask 261120
    %v54 = vsel %vm52, %v36, 0
    %v57 = vsel %vm52, %v37, 0
    %v60 = vsel %vm52, %v38, 0
    %v63 = vsel %vm52, %v39, 0
    %v66 = vsel %vm52, %v40, 0
    %v69 = vsel %vm52, %v41, 0
    %v72 = vsel %vm52, %v42, 0
    %v75 = vsel %vm52, %v43, 0
    %v78 = vsel %vm52, %v44, 0
    %v81 = vsel %vm52, %v45, 0
    %v84 = vsel %vm52, %v46, 0
    %v87 = vsel %vm52, %v47, 0
    %v90 = vsel %vm52, %v48, 0
    %v93 = vsel %vm52, %v49, 0
    %v96 = vsel %vm52, %v50, 0
    %v99 = vsel %vm52, %v51, 0
    %101 = vmatprep.subr.mxu0 0.0
    %102 = vmatpush1.msra.mxu0 %v32
    %103 = vmatprep.subr.mxu0 0.0
    %104 = vmatpush1.msra.mxu0 %v33
    %105 = vmatprep.subr.mxu0 0.0
    %106 = vmatpush1.msra.mxu0 %v34
    %107 = vmatprep.subr.mxu0 0.0
    %108 = vmatpush1.msra.mxu0 %v35
    %109 = vmatprep.subr.mxu0 0.0
    %110 = vmatpush1.msra.mxu0 0.0
    %111 = vmatprep.subr.mxu0 0.0
    %112 = vmatpush1.msra.mxu0 0.0
    %113 = vmatprep.subr.mxu0 0.0
    %114 = vmatpush1.msra.mxu0 0.0
    %115 = vmatprep.subr.mxu0 0.0
    %116 = vmatpush1.msra.mxu0 0.0
    %117 = vmatprep.subr.mxu0 0.0
    %118 = vmatpush1.msra.mxu0 0.0
    %119 = vmatprep.subr.mxu0 0.0
    %120 = vmatpush1.msra.mxu0 0.0
    %121 = vmatprep.subr.mxu0 0.0
    %122 = vmatpush1.msra.mxu0 0.0
    %123 = vmatprep.subr.mxu0 0.0
    %124 = vmatpush1.msra.mxu0 0.0
    %125 = vmatprep.subr.mxu0 0.0
    %126 = vmatpush1.msra.mxu0 0.0
    %127 = vmatprep.subr.mxu0 0.0
    %128 = vmatpush1.msra.mxu0 0.0
    %129 = vmatprep.subr.mxu0 0.0
    %130 = vmatpush1.msra.mxu0 0.0
    %131 = vmatprep.subr.mxu0 0.0
    %132 = vmatpush1.msra.mxu0 0.0
    %133 = vmatprep.subr.mxu0 0.0
    %134 = vmatpush1.msra.mxu0 0.0
    %135 = vmatprep.subr.mxu0 0.0
    %136 = vmatpush1.msra.mxu0 0.0
    %137 = vmatprep.subr.mxu0 0.0
    %138 = vmatpush1.msra.mxu0 0.0
    %139 = vmatprep.subr.mxu0 0.0
    %140 = vmatpush1.msra.mxu0 0.0
    %141 = vmatprep.subr.mxu0 0.0
    %142 = vmatpush1.msra.mxu0 0.0
    %143 = vmatprep.subr.mxu0 0.0
    %144 = vmatpush1.msra.mxu0 0.0
    %145 = vmatprep.subr.mxu0 0.0
    %146 = vmatpush1.msra.mxu0 0.0
    %147 = vmatprep.subr.mxu0 0.0
    %148 = vmatpush1.msra.mxu0 0.0
    %149 = vmatprep.subr.mxu0 0.0
    %150 = vmatpush1.msra.mxu0 0.0
    %151 = vmatprep.subr.mxu0 0.0
    %152 = vmatpush1.msra.mxu0 0.0
    %153 = vmatprep.subr.mxu0 0.0
    %154 = vmatpush1.msra.mxu0 0.0
    %155 = vmatprep.subr.mxu0 0.0
    %156 = vmatpush1.msra.mxu0 0.0
    %157 = vmatprep.subr.mxu0 0.0
    %158 = vmatpush1.msra.mxu0 0.0
    %159 = vmatprep.subr.mxu0 0.0
    %160 = vmatpush1.msra.mxu0 0.0
    %161 = vmatprep.subr.mxu0 0.0
    %162 = vmatpush1.msra.mxu0 0.0
    %163 = vmatprep.subr.mxu0 0.0
    %164 = vmatpush1.msra.mxu0 0.0
    %165 = vmatprep.mubr.f32.mxu0 0.0
    %166 = vmatmul.mubr.f32.gmra.mrb[0].mxu0 %v54
    %v167 = vpop.f32.mrb[0].mxu0
    %v168 = vadd.f32 0.0, %v167
    %v169 = vpop.f32.mrb[0].mxu0
    %170 = vmatprep.mubr.f32.mxu0 0.0
    %171 = vmatmul.mubr.f32.gmra.mrb[0].mxu0 %v57
    %v172 = vpop.f32.mrb[0].mxu0
    %v173 = vadd.f32 0.0, %v172
    %v174 = vpop.f32.mrb[0].mxu0
    %175 = vmatprep.mubr.f32.mxu0 0.0
    %176 = vmatmul.mubr.f32.gmra.mrb[0].mxu0 %v60
    %v177 = vpop.f32.mrb[0].mxu0
    %v178 = vadd.f32 0.0, %v177
    %v179 = vpop.f32.mrb[0].mxu0
    %180 = vmatprep.mubr.f32.mxu0 0.0
    %181 = vmatmul.mubr.f32.gmra.mrb[0].mxu0 %v63
    %v182 = vpop.f32.mrb[0].mxu0
    %v183 = vadd.f32 0.0, %v182
    %v184 = vpop.f32.mrb[0].mxu0
    %185 = vmatprep.mubr.f32.mxu0 0.0
    %186 = vmatmul.mubr.f32.gmra.mrb[0].mxu0 %v66
    %v187 = vpop.f32.mrb[0].mxu0
    %v188 = vadd.f32 0.0, %v187
    %v189 = vpop.f32.mrb[0].mxu0
    %190 = vmatprep.mubr.f32.mxu0 0.0
    %191 = vmatmul.mubr.f32.gmra.mrb[0].mxu0 %v69
    %v192 = vpop.f32.mrb[0].mxu0
    %v193 = vadd.f32 0.0, %v192
    %v194 = vpop.f32.mrb[0].mxu0
    %195 = vmatprep.mubr.f32.mxu0 0.0
    %196 = vmatmul.mubr.f32.gmra.mrb[0].mxu0 %v72
    %v197 = vpop.f32.mrb[0].mxu0
    %v198 = vadd.f32 0.0, %v197
    %v199 = vpop.f32.mrb[0].mxu0
    %200 = vmatprep.mubr.f32.mxu0 0.0
    %201 = vmatmul.mubr.f32.gmra.mrb[0].mxu0 %v75
    %v202 = vpop.f32.mrb[0].mxu0
    %v203 = vadd.f32 0.0, %v202
    %v204 = vpop.f32.mrb[0].mxu0
    %205 = vmatprep.mubr.f32.mxu0 0.0
    %206 = vmatmul.mubr.f32.gmra.mrb[0].mxu0 %v78
    %v207 = vpop.f32.mrb[0].mxu0
    %v208 = vadd.f32 0.0, %v207
    %v209 = vpop.f32.mrb[0].mxu0
    %210 = vmatprep.mubr.f32.mxu0 0.0
    %211 = vmatmul.mubr.f32.gmra.mrb[0].mxu0 %v81
    %v212 = vpop.f32.mrb[0].mxu0
    %v213 = vadd.f32 0.0, %v212
    %v214 = vpop.f32.mrb[0].mxu0
    %215 = vmatprep.mubr.f32.mxu0 0.0
    %216 = vmatmul.mubr.f32.gmra.mrb[0].mxu0 %v84
    %v217 = vpop.f32.mrb[0].mxu0
    %v218 = vadd.f32 0.0, %v217
    %v219 = vpop.f32.mrb[0].mxu0
    %220 = vmatprep.mubr.f32.mxu0 0.0
    %221 = vmatmul.mubr.f32.gmra.mrb[0].mxu0 %v87
    %v222 = vpop.f32.mrb[0].mxu0
    %v223 = vadd.f32 0.0, %v222
    %v224 = vpop.f32.mrb[0].mxu0
    %225 = vmatprep.mubr.f32.mxu0 0.0
    %226 = vmatmul.mubr.f32.gmra.mrb[0].mxu0 %v90
    %v227 = vpop.f32.mrb[0].mxu0
    %v228 = vadd.f32 0.0, %v227
    %v229 = vpop.f32.mrb[0].mxu0
    %230 = vmatprep.mubr.f32.mxu0 0.0
    %231 = vmatmul.mubr.f32.gmra.mrb[0].mxu0 %v93
    %v232 = vpop.f32.mrb[0].mxu0
    %v233 = vadd.f32 0.0, %v232
    %v234 = vpop.f32.mrb[0].mxu0
    %235 = vmatprep.mubr.f32.mxu0 0.0
    %236 = vmatmul.mubr.f32.gmra.mrb[0].mxu0 %v96
    %v237 = vpop.f32.mrb[0].mxu0
    %v238 = vadd.f32 0.0, %v237
    %v239 = vpop.f32.mrb[0].mxu0
    %240 = vmatprep.mubr.f32.mxu0 0.0
    %241 = vmatmul.mubr.f32.gmra.mrb[0].mxu0 %v99
    %v242 = vpop.f32.mrb[0].mxu0
    %v243 = vadd.f32 0.0, %v242
    %v244 = vpop.f32.mrb[0].mxu0
    %245 = vdwg.mxu0
    %v246 = vmax.f32 %v168, 1e-24
    %v247 = vmax.f32 %v173, 1e-24
    %v248 = vmax.f32 %v178, 1e-24
    %v249 = vmax.f32 %v183, 1e-24
    %v250 = vmax.f32 %v188, 1e-24
    %v251 = vmax.f32 %v193, 1e-24
    %v252 = vmax.f32 %v198, 1e-24
    %v253 = vmax.f32 %v203, 1e-24
    %v254 = vmax.f32 %v208, 1e-24
    %v255 = vmax.f32 %v213, 1e-24
    %v256 = vmax.f32 %v218, 1e-24
    %v257 = vmax.f32 %v223, 1e-24
    %v258 = vmax.f32 %v228, 1e-24
    %v259 = vmax.f32 %v233, 1e-24
    %v260 = vmax.f32 %v238, 1e-24
    %v261 = vmax.f32 %v243, 1e-24
    %v262 = vrsqrt.pop %v246
    %v263 = vrsqrt.pop %v247
    %v264 = vrsqrt.pop %v248
    %v265 = vrsqrt.pop %v249
    %v266 = vrsqrt.pop %v250
    %v267 = vrsqrt.pop %v251
    %v268 = vrsqrt.pop %v252
    %v269 = vrsqrt.pop %v253
    %v270 = vrsqrt.pop %v254
    %v271 = vrsqrt.pop %v255
    %v272 = vrsqrt.pop %v256
    %v273 = vrsqrt.pop %v257
    %v274 = vrsqrt.pop %v258
    %v275 = vrsqrt.pop %v259
    %v276 = vrsqrt.pop %v260
    %v277 = vrsqrt.pop %v261
    %v278 = vmul.f32 %v262, 0.5
    %v279 = vmul.f32 %v263, 0.5
    %v280 = vmul.f32 %v264, 0.5
    %v281 = vmul.f32 %v265, 0.5
    %v282 = vmul.f32 %v266, 0.5
    %v283 = vmul.f32 %v267, 0.5
    %v284 = vmul.f32 %v268, 0.5
    %v285 = vmul.f32 %v269, 0.5
    %v286 = vmul.f32 %v270, 0.5
    %v287 = vmul.f32 %v271, 0.5
    %v288 = vmul.f32 %v272, 0.5
    %v289 = vmul.f32 %v273, 0.5
    %v290 = vmul.f32 %v274, 0.5
    %v291 = vmul.f32 %v275, 0.5
    %v292 = vmul.f32 %v276, 0.5
    %v293 = vmul.f32 %v277, 0.5
    %v294 = vlaneseq
    %v295 = vshrl.u32 %v294, 7
    %v296 = vsub.s32 0, %v295
    %v297 = vrot.slane %v31, %v296
    %v298 = vmul.f32 %v15, %v297
    %v299 = vmul.f32 %v16, %v297
    %v300 = vmul.f32 %v17, %v297
    %v301 = vmul.f32 %v18, %v297
    %v302 = vmul.f32 %v19, %v297
    %v303 = vmul.f32 %v20, %v297
    %v304 = vmul.f32 %v21, %v297
    %v305 = vmul.f32 %v22, %v297
    %v306 = vmul.f32 %v23, %v297
    %v307 = vmul.f32 %v24, %v297
    %v308 = vmul.f32 %v25, %v297
    %v309 = vmul.f32 %v26, %v297
    %v310 = vmul.f32 %v27, %v297
    %v311 = vmul.f32 %v28, %v297
    %v312 = vmul.f32 %v29, %v297
    %v313 = vmul.f32 %v30, %v297
    %315 = vset.pattern.permute.xlu0 0
    %316 = vperm.xlu0 %315, %v278
    %v317 = vpop.permute.xlu0 %316
    %320 = vset.pattern.permute.xlu0 0
    %321 = vperm.xlu0 %320, %v279
    %v322 = vpop.permute.xlu0 %321
    %325 = vset.pattern.permute.xlu0 0
    %326 = vperm.xlu0 %325, %v280
    %v327 = vpop.permute.xlu0 %326
    %330 = vset.pattern.permute.xlu0 0
    %331 = vperm.xlu0 %330, %v281
    %v332 = vpop.permute.xlu0 %331
    %335 = vset.pattern.permute.xlu0 0
    %336 = vperm.xlu0 %335, %v282
    %v337 = vpop.permute.xlu0 %336
    %340 = vset.pattern.permute.xlu0 0
    %341 = vperm.xlu0 %340, %v283
    %v342 = vpop.permute.xlu0 %341
    %345 = vset.pattern.permute.xlu0 0
    %346 = vperm.xlu0 %345, %v284
    %v347 = vpop.permute.xlu0 %346
    %350 = vset.pattern.permute.xlu0 0
    %351 = vperm.xlu0 %350, %v285
    %v352 = vpop.permute.xlu0 %351
    %355 = vset.pattern.permute.xlu0 0
    %356 = vperm.xlu0 %355, %v286
    %v357 = vpop.permute.xlu0 %356
    %360 = vset.pattern.permute.xlu0 0
    %361 = vperm.xlu0 %360, %v287
    %v362 = vpop.permute.xlu0 %361
    %365 = vset.pattern.permute.xlu0 0
    %366 = vperm.xlu0 %365, %v288
    %v367 = vpop.permute.xlu0 %366
    %370 = vset.pattern.permute.xlu0 0
    %371 = vperm.xlu0 %370, %v289
    %v372 = vpop.permute.xlu0 %371
    %375 = vset.pattern.permute.xlu0 0
    %376 = vperm.xlu0 %375, %v290
    %v377 = vpop.permute.xlu0 %376
    %380 = vset.pattern.permute.xlu0 0
    %381 = vperm.xlu0 %380, %v291
    %v382 = vpop.permute.xlu0 %381
    %385 = vset.pattern.permute.xlu0 0
    %386 = vperm.xlu0 %385, %v292
    %v387 = vpop.permute.xlu0 %386
    %390 = vset.pattern.permute.xlu0 0
    %391 = vperm.xlu0 %390, %v293
    %v392 = vpop.permute.xlu0 %391
    %v394 = vmul.f32 %v298, %v317
    %v395 = vmul.f32 %v299, %v322
    %v396 = vmul.f32 %v300, %v327
    %v397 = vmul.f32 %v301, %v332
    %v398 = vmul.f32 %v302, %v337
    %v399 = vmul.f32 %v303, %v342
    %v400 = vmul.f32 %v304, %v347
    %v401 = vmul.f32 %v305, %v352
    %v402 = vmul.f32 %v306, %v357
    %v403 = vmul.f32 %v307, %v362
    %v404 = vmul.f32 %v308, %v367
    %v405 = vmul.f32 %v309, %v372
    %v406 = vmul.f32 %v310, %v377
    %v407 = vmul.f32 %v311, %v382
    %v408 = vmul.f32 %v312, %v387
    %v409 = vmul.f32 %v313, %v392
    %410 = vst.msk [vmem:[#allocation2] sm:$0xff] %vm52, %v394
    %411 = vst.msk [vmem:[#allocation2 + $0x8] sm:$0xff] %vm52, %v395
    %412 = vst.msk [vmem:[#allocation2 + $0x10] sm:$0xff] %vm52, %v396
    %413 = vst.msk [vmem:[#allocation2 + $0x18] sm:$0xff] %vm52, %v397
    %414 = vst.msk [vmem:[#allocation2 + $0x20] sm:$0xff] %vm52, %v398
    %415 = vst.msk [vmem:[#allocation2 + $0x28] sm:$0xff] %vm52, %v399
    %416 = vst.msk [vmem:[#allocation2 + $0x30] sm:$0xff] %vm52, %v400
    %417 = vst.msk [vmem:[#allocation2 + $0x38] sm:$0xff] %vm52, %v401
    %418 = vst.msk [vmem:[#allocation2 + $0x40] sm:$0xff] %vm52, %v402
    %419 = vst.msk [vmem:[#allocation2 + $0x48] sm:$0xff] %vm52, %v403
    %420 = vst.msk [vmem:[#allocation2 + $0x50] sm:$0xff] %vm52, %v404
    %421 = vst.msk [vmem:[#allocation2 + $0x58] sm:$0xff] %vm52, %v405
    %422 = vst.msk [vmem:[#allocation2 + $0x60] sm:$0xff] %vm52, %v406
    %423 = vst.msk [vmem:[#allocation2 + $0x68] sm:$0xff] %vm52, %v407
    %424 = vst.msk [vmem:[#allocation2 + $0x70] sm:$0xff] %vm52, %v408
    %425 = vst.msk [vmem:[#allocation2 + $0x78] sm:$0xff] %vm52, %v409
    %v426 = vlaneseq
    %v427 = vshrl.u32 %v426, 7
    %v428 = vsub.s32 1, %v427
    %v429 = vrot.slane %v31, %v428
    %v430 = vmul.f32 %v15, %v429
    %v431 = vmul.f32 %v16, %v429
    %v432 = vmul.f32 %v17, %v429
    %v433 = vmul.f32 %v18, %v429
    %v434 = vmul.f32 %v19, %v429
    %v435 = vmul.f32 %v20, %v429
    %v436 = vmul.f32 %v21, %v429
    %v437 = vmul.f32 %v22, %v429
    %v438 = vmul.f32 %v23, %v429
    %v439 = vmul.f32 %v24, %v429
    %v440 = vmul.f32 %v25, %v429
    %v441 = vmul.f32 %v26, %v429
    %v442 = vmul.f32 %v27, %v429
    %v443 = vmul.f32 %v28, %v429
    %v444 = vmul.f32 %v29, %v429
    %v445 = vmul.f32 %v30, %v429
    %446 = vset.pattern.permute.xlu0 1
    %447 = vperm.xlu0 %446, %v278
    %v448 = vpop.permute.xlu0 %447
    %450 = vset.pattern.permute.xlu0 1
    %451 = vperm.xlu0 %450, %v279
    %v452 = vpop.permute.xlu0 %451
    %454 = vset.pattern.permute.xlu0 1
    %455 = vperm.xlu0 %454, %v280
    %v456 = vpop.permute.xlu0 %455
    %458 = vset.pattern.permute.xlu0 1
    %459 = vperm.xlu0 %458, %v281
    %v460 = vpop.permute.xlu0 %459
    %462 = vset.pattern.permute.xlu0 1
    %463 = vperm.xlu0 %462, %v282
    %v464 = vpop.permute.xlu0 %463
    %466 = vset.pattern.permute.xlu0 1
    %467 = vperm.xlu0 %466, %v283
    %v468 = vpop.permute.xlu0 %467
    %470 = vset.pattern.permute.xlu0 1
    %471 = vperm.xlu0 %470, %v284
    %v472 = vpop.permute.xlu0 %471
    %474 = vset.pattern.permute.xlu0 1
    %475 = vperm.xlu0 %474, %v285
    %v476 = vpop.permute.xlu0 %475
    %478 = vset.pattern.permute.xlu0 1
    %479 = vperm.xlu0 %478, %v286
    %v480 = vpop.permute.xlu0 %479
    %482 = vset.pattern.permute.xlu0 1
    %483 = vperm.xlu0 %482, %v287
    %v484 = vpop.permute.xlu0 %483
    %486 = vset.pattern.permute.xlu0 1
    %487 = vperm.xlu0 %486, %v288
    %v488 = vpop.permute.xlu0 %487
    %490 = vset.pattern.permute.xlu0 1
    %491 = vperm.xlu0 %490, %v289
    %v492 = vpop.permute.xlu0 %491
    %494 = vset.pattern.permute.xlu0 1
    %495 = vperm.xlu0 %494, %v290
    %v496 = vpop.permute.xlu0 %495
    %498 = vset.pattern.permute.xlu0 1
    %499 = vperm.xlu0 %498, %v291
    %v500 = vpop.permute.xlu0 %499
    %502 = vset.pattern.permute.xlu0 1
    %503 = vperm.xlu0 %502, %v292
    %v504 = vpop.permute.xlu0 %503
    %506 = vset.pattern.permute.xlu0 1
    %507 = vperm.xlu0 %506, %v293
    %v508 = vpop.permute.xlu0 %507
    %v510 = vmul.f32 %v430, %v448
    %v511 = vmul.f32 %v431, %v452
    %v512 = vmul.f32 %v432, %v456
    %v513 = vmul.f32 %v433, %v460
    %v514 = vmul.f32 %v434, %v464
    %v515 = vmul.f32 %v435, %v468
    %v516 = vmul.f32 %v436, %v472
    %v517 = vmul.f32 %v437, %v476
    %v518 = vmul.f32 %v438, %v480
    %v519 = vmul.f32 %v439, %v484
    %v520 = vmul.f32 %v440, %v488
    %v521 = vmul.f32 %v441, %v492
    %v522 = vmul.f32 %v442, %v496
    %v523 = vmul.f32 %v443, %v500
    %v524 = vmul.f32 %v444, %v504
    %v525 = vmul.f32 %v445, %v508
    %542 = vrot.lane.b32.xlu0 %v510, 32
    %v543 = vpop.permute.xlu0 %542
    %544 = vrot.lane.b32.xlu0 %v511, 32
    %v545 = vpop.permute.xlu0 %544
    %546 = vrot.lane.b32.xlu0 %v512, 32
    %v547 = vpop.permute.xlu0 %546
    %548 = vrot.lane.b32.xlu0 %v513, 32
    %v549 = vpop.permute.xlu0 %548
    %550 = vrot.lane.b32.xlu0 %v514, 32
    %v551 = vpop.permute.xlu0 %550
    %552 = vrot.lane.b32.xlu0 %v515, 32
    %v553 = vpop.permute.xlu0 %552
    %554 = vrot.lane.b32.xlu0 %v516, 32
    %v555 = vpop.permute.xlu0 %554
    %556 = vrot.lane.b32.xlu0 %v517, 32
    %v557 = vpop.permute.xlu0 %556
    %558 = vrot.lane.b32.xlu0 %v518, 32
    %v559 = vpop.permute.xlu0 %558
    %560 = vrot.lane.b32.xlu0 %v519, 32
    %v561 = vpop.permute.xlu0 %560
    %562 = vrot.lane.b32.xlu0 %v520, 32
    %v563 = vpop.permute.xlu0 %562
    %564 = vrot.lane.b32.xlu0 %v521, 32
    %v565 = vpop.permute.xlu0 %564
    %566 = vrot.lane.b32.xlu0 %v522, 32
    %v567 = vpop.permute.xlu0 %566
    %568 = vrot.lane.b32.xlu0 %v523, 32
    %v569 = vpop.permute.xlu0 %568
    %570 = vrot.lane.b32.xlu0 %v524, 32
    %v571 = vpop.permute.xlu0 %570
    %572 = vrot.lane.b32.xlu0 %v525, 32
    %v573 = vpop.permute.xlu0 %572
    %vm590 = vcmask 523520
    %591 = vst.msk [vmem:[#allocation2] sm:$0xff] %vm590, %v543
    %592 = vst.msk [vmem:[#allocation2 + $0x8] sm:$0xff] %vm590, %v545
    %593 = vst.msk [vmem:[#allocation2 + $0x10] sm:$0xff] %vm590, %v547
    %594 = vst.msk [vmem:[#allocation2 + $0x18] sm:$0xff] %vm590, %v549
    %595 = vst.msk [vmem:[#allocation2 + $0x20] sm:$0xff] %vm590, %v551
    %596 = vst.msk [vmem:[#allocation2 + $0x28] sm:$0xff] %vm590, %v553
    %597 = vst.msk [vmem:[#allocation2 + $0x30] sm:$0xff] %vm590, %v555
    %598 = vst.msk [vmem:[#allocation2 + $0x38] sm:$0xff] %vm590, %v557
    %599 = vst.msk [vmem:[#allocation2 + $0x40] sm:$0xff] %vm590, %v559
    %600 = vst.msk [vmem:[#allocation2 + $0x48] sm:$0xff] %vm590, %v561
    %601 = vst.msk [vmem:[#allocation2 + $0x50] sm:$0xff] %vm590, %v563
    %602 = vst.msk [vmem:[#allocation2 + $0x58] sm:$0xff] %vm590, %v565
    %603 = vst.msk [vmem:[#allocation2 + $0x60] sm:$0xff] %vm590, %v567
    %604 = vst.msk [vmem:[#allocation2 + $0x68] sm:$0xff] %vm590, %v569
    %605 = vst.msk [vmem:[#allocation2 + $0x70] sm:$0xff] %vm590, %v571
    %606 = vst.msk [vmem:[#allocation2 + $0x78] sm:$0xff] %vm590, %v573
    %v607 = vlaneseq
    %v608 = vshrl.u32 %v607, 7
    %v609 = vsub.s32 2, %v608
    %v610 = vrot.slane %v31, %v609
    %v611 = vmul.f32 %v15, %v610
    %v612 = vmul.f32 %v16, %v610
    %v613 = vmul.f32 %v17, %v610
    %v614 = vmul.f32 %v18, %v610
    %v615 = vmul.f32 %v19, %v610
    %v616 = vmul.f32 %v20, %v610
    %v617 = vmul.f32 %v21, %v610
    %v618 = vmul.f32 %v22, %v610
    %v619 = vmul.f32 %v23, %v610
    %v620 = vmul.f32 %v24, %v610
    %v621 = vmul.f32 %v25, %v610
    %v622 = vmul.f32 %v26, %v610
    %v623 = vmul.f32 %v27, %v610
    %v624 = vmul.f32 %v28, %v610
    %v625 = vmul.f32 %v29, %v610
    %v626 = vmul.f32 %v30, %v610
    %627 = vset.pattern.permute.xlu0 2
    %628 = vperm.xlu0 %627, %v278
    %v629 = vpop.permute.xlu0 %628
    %631 = vset.pattern.permute.xlu0 2
    %632 = vperm.xlu0 %631, %v279
    %v633 = vpop.permute.xlu0 %632
    %635 = vset.pattern.permute.xlu0 2
    %636 = vperm.xlu0 %635, %v280
    %v637 = vpop.permute.xlu0 %636
    %639 = vset.pattern.permute.xlu0 2
    %640 = vperm.xlu0 %639, %v281
    %v641 = vpop.permute.xlu0 %640
    %643 = vset.pattern.permute.xlu0 2
    %644 = vperm.xlu0 %643, %v282
    %v645 = vpop.permute.xlu0 %644
    %647 = vset.pattern.permute.xlu0 2
    %648 = vperm.xlu0 %647, %v283
    %v649 = vpop.permute.xlu0 %648
    %651 = vset.pattern.permute.xlu0 2
    %652 = vperm.xlu0 %651, %v284
    %v653 = vpop.permute.xlu0 %652
    %655 = vset.pattern.permute.xlu0 2
    %656 = vperm.xlu0 %655, %v285
    %v657 = vpop.permute.xlu0 %656
    %659 = vset.pattern.permute.xlu0 2
    %660 = vperm.xlu0 %659, %v286
    %v661 = vpop.permute.xlu0 %660
    %663 = vset.pattern.permute.xlu0 2
    %664 = vperm.xlu0 %663, %v287
    %v665 = vpop.permute.xlu0 %664
    %667 = vset.pattern.permute.xlu0 2
    %668 = vperm.xlu0 %667, %v288
    %v669 = vpop.permute.xlu0 %668
    %671 = vset.pattern.permute.xlu0 2
    %672 = vperm.xlu0 %671, %v289
    %v673 = vpop.permute.xlu0 %672
    %675 = vset.pattern.permute.xlu0 2
    %676 = vperm.xlu0 %675, %v290
    %v677 = vpop.permute.xlu0 %676
    %679 = vset.pattern.permute.xlu0 2
    %680 = vperm.xlu0 %679, %v291
    %v681 = vpop.permute.xlu0 %680
    %683 = vset.pattern.permute.xlu0 2
    %684 = vperm.xlu0 %683, %v292
    %v685 = vpop.permute.xlu0 %684
    %687 = vset.pattern.permute.xlu0 2
    %688 = vperm.xlu0 %687, %v293
    %v689 = vpop.permute.xlu0 %688
    %v691 = vmul.f32 %v611, %v629
    %v692 = vmul.f32 %v612, %v633
    %v693 = vmul.f32 %v613, %v637
    %v694 = vmul.f32 %v614, %v641
    %v695 = vmul.f32 %v615, %v645
    %v696 = vmul.f32 %v616, %v649
    %v697 = vmul.f32 %v617, %v653
    %v698 = vmul.f32 %v618, %v657
    %v699 = vmul.f32 %v619, %v661
    %v700 = vmul.f32 %v620, %v665
    %v701 = vmul.f32 %v621, %v669
    %v702 = vmul.f32 %v622, %v673
    %v703 = vmul.f32 %v623, %v677
    %v704 = vmul.f32 %v624, %v681
    %v705 = vmul.f32 %v625, %v685
    %v706 = vmul.f32 %v626, %v689
    %723 = vrot.lane.b32.xlu0 %v691, 64
    %v724 = vpop.permute.xlu0 %723
    %725 = vrot.lane.b32.xlu0 %v692, 64
    %v726 = vpop.permute.xlu0 %725
    %727 = vrot.lane.b32.xlu0 %v693, 64
    %v728 = vpop.permute.xlu0 %727
    %729 = vrot.lane.b32.xlu0 %v694, 64
    %v730 = vpop.permute.xlu0 %729
    %731 = vrot.lane.b32.xlu0 %v695, 64
    %v732 = vpop.permute.xlu0 %731
    %733 = vrot.lane.b32.xlu0 %v696, 64
    %v734 = vpop.permute.xlu0 %733
    %735 = vrot.lane.b32.xlu0 %v697, 64
    %v736 = vpop.permute.xlu0 %735
    %737 = vrot.lane.b32.xlu0 %v698, 64
    %v738 = vpop.permute.xlu0 %737
    %739 = vrot.lane.b32.xlu0 %v699, 64
    %v740 = vpop.permute.xlu0 %739
    %741 = vrot.lane.b32.xlu0 %v700, 64
    %v742 = vpop.permute.xlu0 %741
    %743 = vrot.lane.b32.xlu0 %v701, 64
    %v744 = vpop.permute.xlu0 %743
    %745 = vrot.lane.b32.xlu0 %v702, 64
    %v746 = vpop.permute.xlu0 %745
    %747 = vrot.lane.b32.xlu0 %v703, 64
    %v748 = vpop.permute.xlu0 %747
    %749 = vrot.lane.b32.xlu0 %v704, 64
    %v750 = vpop.permute.xlu0 %749
    %751 = vrot.lane.b32.xlu0 %v705, 64
    %v752 = vpop.permute.xlu0 %751
    %753 = vrot.lane.b32.xlu0 %v706, 64
    %v754 = vpop.permute.xlu0 %753
    %vm771 = vcmask 785920
    %772 = vst.msk [vmem:[#allocation2] sm:$0xff] %vm771, %v724
    %773 = vst.msk [vmem:[#allocation2 + $0x8] sm:$0xff] %vm771, %v726
    %774 = vst.msk [vmem:[#allocation2 + $0x10] sm:$0xff] %vm771, %v728
    %775 = vst.msk [vmem:[#allocation2 + $0x18] sm:$0xff] %vm771, %v730
    %776 = vst.msk [vmem:[#allocation2 + $0x20] sm:$0xff] %vm771, %v732
    %777 = vst.msk [vmem:[#allocation2 + $0x28] sm:$0xff] %vm771, %v734
    %778 = vst.msk [vmem:[#allocation2 + $0x30] sm:$0xff] %vm771, %v736
    %779 = vst.msk [vmem:[#allocation2 + $0x38] sm:$0xff] %vm771, %v738
    %780 = vst.msk [vmem:[#allocation2 + $0x40] sm:$0xff] %vm771, %v740
    %781 = vst.msk [vmem:[#allocation2 + $0x48] sm:$0xff] %vm771, %v742
    %782 = vst.msk [vmem:[#allocation2 + $0x50] sm:$0xff] %vm771, %v744
    %783 = vst.msk [vmem:[#allocation2 + $0x58] sm:$0xff] %vm771, %v746
    %784 = vst.msk [vmem:[#allocation2 + $0x60] sm:$0xff] %vm771, %v748
    %785 = vst.msk [vmem:[#allocation2 + $0x68] sm:$0xff] %vm771, %v750
    %786 = vst.msk [vmem:[#allocation2 + $0x70] sm:$0xff] %vm771, %v752
    %787 = vst.msk [vmem:[#allocation2 + $0x78] sm:$0xff] %vm771, %v754
    %v788 = vlaneseq
    %v789 = vshrl.u32 %v788, 7
    %v790 = vsub.s32 3, %v789
    %v791 = vrot.slane %v31, %v790
    %v792 = vmul.f32 %v15, %v791
    %v793 = vmul.f32 %v16, %v791
    %v794 = vmul.f32 %v17, %v791
    %v795 = vmul.f32 %v18, %v791
    %v796 = vmul.f32 %v19, %v791
    %v797 = vmul.f32 %v20, %v791
    %v798 = vmul.f32 %v21, %v791
    %v799 = vmul.f32 %v22, %v791
    %v800 = vmul.f32 %v23, %v791
    %v801 = vmul.f32 %v24, %v791
    %v802 = vmul.f32 %v25, %v791
    %v803 = vmul.f32 %v26, %v791
    %v804 = vmul.f32 %v27, %v791
    %v805 = vmul.f32 %v28, %v791
    %v806 = vmul.f32 %v29, %v791
    %v807 = vmul.f32 %v30, %v791
    %808 = vset.pattern.permute.xlu0 3
    %809 = vperm.xlu0 %808, %v278
    %v810 = vpop.permute.xlu0 %809
    %812 = vset.pattern.permute.xlu0 3
    %813 = vperm.xlu0 %812, %v279
    %v814 = vpop.permute.xlu0 %813
    %816 = vset.pattern.permute.xlu0 3
    %817 = vperm.xlu0 %816, %v280
    %v818 = vpop.permute.xlu0 %817
    %820 = vset.pattern.permute.xlu0 3
    %821 = vperm.xlu0 %820, %v281
    %v822 = vpop.permute.xlu0 %821
    %824 = vset.pattern.permute.xlu0 3
    %825 = vperm.xlu0 %824, %v282
    %v826 = vpop.permute.xlu0 %825
    %828 = vset.pattern.permute.xlu0 3
    %829 = vperm.xlu0 %828, %v283
    %v830 = vpop.permute.xlu0 %829
    %832 = vset.pattern.permute.xlu0 3
    %833 = vperm.xlu0 %832, %v284
    %v834 = vpop.permute.xlu0 %833
    %836 = vset.pattern.permute.xlu0 3
    %837 = vperm.xlu0 %836, %v285
    %v838 = vpop.permute.xlu0 %837
    %840 = vset.pattern.permute.xlu0 3
    %841 = vperm.xlu0 %840, %v286
    %v842 = vpop.permute.xlu0 %841
    %844 = vset.pattern.permute.xlu0 3
    %845 = vperm.xlu0 %844, %v287
    %v846 = vpop.permute.xlu0 %845
    %848 = vset.pattern.permute.xlu0 3
    %849 = vperm.xlu0 %848, %v288
    %v850 = vpop.permute.xlu0 %849
    %852 = vset.pattern.permute.xlu0 3
    %853 = vperm.xlu0 %852, %v289
    %v854 = vpop.permute.xlu0 %853
    %856 = vset.pattern.permute.xlu0 3
    %857 = vperm.xlu0 %856, %v290
    %v858 = vpop.permute.xlu0 %857
    %860 = vset.pattern.permute.xlu0 3
    %861 = vperm.xlu0 %860, %v291
    %v862 = vpop.permute.xlu0 %861
    %864 = vset.pattern.permute.xlu0 3
    %865 = vperm.xlu0 %864, %v292
    %v866 = vpop.permute.xlu0 %865
    %868 = vset.pattern.permute.xlu0 3
    %869 = vperm.xlu0 %868, %v293
    %v870 = vpop.permute.xlu0 %869
    %v872 = vmul.f32 %v792, %v810
    %v873 = vmul.f32 %v793, %v814
    %v874 = vmul.f32 %v794, %v818
    %v875 = vmul.f32 %v795, %v822
    %v876 = vmul.f32 %v796, %v826
    %v877 = vmul.f32 %v797, %v830
    %v878 = vmul.f32 %v798, %v834
    %v879 = vmul.f32 %v799, %v838
    %v880 = vmul.f32 %v800, %v842
    %v881 = vmul.f32 %v801, %v846
    %v882 = vmul.f32 %v802, %v850
    %v883 = vmul.f32 %v803, %v854
    %v884 = vmul.f32 %v804, %v858
    %v885 = vmul.f32 %v805, %v862
    %v886 = vmul.f32 %v806, %v866
    %v887 = vmul.f32 %v807, %v870
    %904 = vrot.lane.b32.xlu0 %v872, 96
    %v905 = vpop.permute.xlu0 %904
    %906 = vrot.lane.b32.xlu0 %v873, 96
    %v907 = vpop.permute.xlu0 %906
    %908 = vrot.lane.b32.xlu0 %v874, 96
    %v909 = vpop.permute.xlu0 %908
    %910 = vrot.lane.b32.xlu0 %v875, 96
    %v911 = vpop.permute.xlu0 %910
    %912 = vrot.lane.b32.xlu0 %v876, 96
    %v913 = vpop.permute.xlu0 %912
    %914 = vrot.lane.b32.xlu0 %v877, 96
    %v915 = vpop.permute.xlu0 %914
    %916 = vrot.lane.b32.xlu0 %v878, 96
    %v917 = vpop.permute.xlu0 %916
    %918 = vrot.lane.b32.xlu0 %v879, 96
    %v919 = vpop.permute.xlu0 %918
    %920 = vrot.lane.b32.xlu0 %v880, 96
    %v921 = vpop.permute.xlu0 %920
    %922 = vrot.lane.b32.xlu0 %v881, 96
    %v923 = vpop.permute.xlu0 %922
    %924 = vrot.lane.b32.xlu0 %v882, 96
    %v925 = vpop.permute.xlu0 %924
    %926 = vrot.lane.b32.xlu0 %v883, 96
    %v927 = vpop.permute.xlu0 %926
    %928 = vrot.lane.b32.xlu0 %v884, 96
    %v929 = vpop.permute.xlu0 %928
    %930 = vrot.lane.b32.xlu0 %v885, 96
    %v931 = vpop.permute.xlu0 %930
    %932 = vrot.lane.b32.xlu0 %v886, 96
    %v933 = vpop.permute.xlu0 %932
    %934 = vrot.lane.b32.xlu0 %v887, 96
    %v935 = vpop.permute.xlu0 %934
    %vm952 = vcmask 1048320
    %953 = vst.msk [vmem:[#allocation2] sm:$0xff] %vm952, %v905
    %954 = vst.msk [vmem:[#allocation2 + $0x8] sm:$0xff] %vm952, %v907
    %955 = vst.msk [vmem:[#allocation2 + $0x10] sm:$0xff] %vm952, %v909
    %956 = vst.msk [vmem:[#allocation2 + $0x18] sm:$0xff] %vm952, %v911
    %957 = vst.msk [vmem:[#allocation2 + $0x20] sm:$0xff] %vm952, %v913
    %958 = vst.msk [vmem:[#allocation2 + $0x28] sm:$0xff] %vm952, %v915
    %959 = vst.msk [vmem:[#allocation2 + $0x30] sm:$0xff] %vm952, %v917
    %960 = vst.msk [vmem:[#allocation2 + $0x38] sm:$0xff] %vm952, %v919
    %961 = vst.msk [vmem:[#allocation2 + $0x40] sm:$0xff] %vm952, %v921
    %962 = vst.msk [vmem:[#allocation2 + $0x48] sm:$0xff] %vm952, %v923
    %963 = vst.msk [vmem:[#allocation2 + $0x50] sm:$0xff] %vm952, %v925
    %964 = vst.msk [vmem:[#allocation2 + $0x58] sm:$0xff] %vm952, %v927
    %965 = vst.msk [vmem:[#allocation2 + $0x60] sm:$0xff] %vm952, %v929
    %966 = vst.msk [vmem:[#allocation2 + $0x68] sm:$0xff] %vm952, %v931
    %967 = vst.msk [vmem:[#allocation2 + $0x70] sm:$0xff] %vm952, %v933
    %968 = vst.msk [vmem:[#allocation2 + $0x78] sm:$0xff] %vm952, %v935
    // Predicated region
    $region14: #{tpu_custom_call.1} parent=1 // pred_check
      _
    $region15: #{tpu_custom_call.1} parent=1 // pred_check_branch
      %970 = sbr.rel (0) target = $region17
    $region16: #{tpu_custom_call.1} parent=1 // pred_region
      %s972 = ssub.s32 2048, 2048
      %973 = vsyncadd [#allocation3], %s972
      %s974 = sshll.u32 [#allocation2], 4
      %s975 = int_to_ptr.vmem [resolvable:$true] %s974
      %980 = dma.vmem_to_hbm [thread:$0]  %s975, 2048, %s3, [#allocation3], 128, 128, 8
    $region17: #{tpu_custom_call.1} parent=1 // pred_fallthru
      _
    // Predicated region
    $region18: #{tpu_custom_call.1} parent=1 // pred_check
      _
    $region19: #{tpu_custom_call.1} parent=1 // pred_check_branch
      %982 = sbr.rel (0) target = $region21
    $region20: #{tpu_custom_call.1} parent=1 // pred_region
      %983 = dma.done [#allocation3], 2048
    $region21: #{tpu_custom_call.1} parent=1 // pred_fallthru
      _
    %984 = vsyncpa [#allocation3], 1

</llo_original>
